<compile_context>
chip_gen: v6e
topology: v6e:2x2x1
jax: 0.10.0
libtpu: 0.0.40
codegen_flags: <defaults>
</compile_context>

<pallas_src>
import functools

import jax
import jax.numpy as jnp
from jax.experimental import pallas as pl
from jax.experimental.pallas import tpu as pltpu


def _round_up(v, m):
    return ((v + m - 1) // m) * m


def _pick_block_rows(n, requested):
    if requested >= n:
        return n
    return max(8, (min(requested, n) // 8) * 8)


# ----------------------------------------------------------------------------
# Fused per-layer kernel: projection + masked attention softmax + aggregation
# + skip + bias + ELU. One grid step = one tile of target-node rows.
# ----------------------------------------------------------------------------
def _gat_layer_kernel(adj_ref, xa_ref, wa_ref, ssrc_ref, xt_ref, wt_ref,
                      bias_ref, out_ref, *, num_heads, f_out, concat,
                      apply_elu, out_dim, out_pad):
    H, F = num_heads, f_out
    Fp = F + 1

    adjf = adj_ref[...].astype(jnp.float32)               # (TM, N) 0/1 mask
    neg = (adjf - jnp.float32(1.0)) * jnp.float32(1e30)   # 0 on edges, -1e30 off

    # Per-source-node projections with a ones column per head, one MXU pass.
    # proj_aug[:, h*(F+1):(h+1)*(F+1)] = [proj_h | 1]; cast to bf16 so the
    # aggregation matmul below runs on the bf16-native MXU.
    proj_aug = jnp.dot(xa_ref[...], wa_ref[...],
                       preferred_element_type=jnp.float32).astype(jnp.bfloat16)

    # Target scores + skip projections for this row tile in one small matmul.
    small = jnp.dot(xt_ref[...], wt_ref[...], preferred_element_type=jnp.float32)
    s_trg = small[:, :H]                                   # (TM, H)
    skip = small[:, H:]                                    # (TM, H*F)
    s_src = ssrc_ref[...]                                  # (H, N) resident

    parts = []
    acc = None
    for h in range(H):
        # e[i, j] = s_trg[i, h] + s_src[h, j]
        e = s_trg[:, h:h + 1] + s_src[h:h + 1, :]          # (TM, N)
        e = jnp.maximum(e, jnp.float32(0.2) * e)           # LeakyReLU(0.2)
        e = e + neg                                        # additive mask
        m = jnp.maximum(jnp.max(e, axis=1, keepdims=True), jnp.float32(0.0))
        p = jnp.exp(e - m).astype(jnp.bfloat16)            # non-edges -> 0, bf16

        # [aggregate | denom] in ONE bf16 MXU matmul (ones column folds the
        # softmax denominator into the matmul).
        agg_d = jnp.dot(p, proj_aug[:, h * Fp:(h + 1) * Fp],
                        preferred_element_type=jnp.float32)   # (TM, F+1)
        inv = pl.reciprocal(agg_d[:, F:F + 1] + jnp.float32(1e-16), approx=True)
        out_h = agg_d[:, :F] * inv + skip[:, h * F:(h + 1) * F]

        if concat:
            parts.append(out_h)
        else:
            acc = out_h if acc is None else acc + out_h

    if concat:
        y = jnp.concatenate(parts, axis=-1)                # (TM, H*F)
    else:
        y = acc * jnp.float32(1.0 / H)                     # mean over heads

    if out_pad > out_dim:                                  # lane-dense output slab
        y = jnp.concatenate(
            [y, jnp.zeros((y.shape[0], out_pad - out_dim), jnp.float32)], axis=-1)
    y = y + bias_ref[...]
    if apply_elu:
        y = jnp.where(y > 0, y, jnp.exp(y) - jnp.float32(1.0))   # ELU(alpha=1)
    out_ref[...] = y                                       # single unmasked store


def gat_layer_pallas(x, adj_bf16, p, *, block_rows=256):
    n, f_in = x.shape
    H, F = p["num_heads"], p["f_out"]
    HF = H * F
    out_dim, out_pad = p["out_dim"], p["out_pad"]
    tm = _pick_block_rows(n, block_rows)

    # Tiny XLA glue: source scores for all nodes, laid out (H, N).
    s_src_t = (x @ p["w_src_fold"]).T                      # (H, N) f32
    x_aug = jnp.concatenate([x, jnp.ones((n, 1), x.dtype)], axis=1)  # (N, f_in+1)

    kernel = functools.partial(
        _gat_layer_kernel, num_heads=H, f_out=F, concat=p["concat"],
        apply_elu=p["apply_elu"], out_dim=out_dim, out_pad=out_pad)

    out = pl.pallas_call(
        kernel,
        out_shape=jax.ShapeDtypeStruct((n, out_pad), jnp.float32),
        grid=(pl.cdiv(n, tm),),
        in_specs=[
            pl.BlockSpec((tm, n), lambda i: (i, 0)),                 # adj tile (bf16)
            pl.BlockSpec((n, f_in + 1), lambda i: (0, 0)),           # [x | 1] (resident)
            pl.BlockSpec((f_in + 1, H * (F + 1)), lambda i: (0, 0)),  # w_aug (resident)
            pl.BlockSpec((H, n), lambda i: (0, 0)),                  # s_src_t (resident)
            pl.BlockSpec((tm, f_in), lambda i: (i, 0)),              # x row tile
            pl.BlockSpec((f_in, H + HF), lambda i: (0, 0)),          # [w_trg | w_skip]
            pl.BlockSpec((1, out_pad), lambda i: (0, 0)),            # padded bias
        ],
        out_specs=pl.BlockSpec((tm, out_pad), lambda i: (i, 0)),
        compiler_params=pltpu.CompilerParams(
            dimension_semantics=("parallel",),
            vmem_limit_bytes=64 * 1024 * 1024),
    )(adj_bf16, x_aug, p["w_aug"], s_src_t, x, p["w_tile"], p["bias_pad"])
    return out[:, :out_dim]


# ----------------------------------------------------------------------------
# Plain-JAX glue: deterministic parameter init, folded/augmented weight
# construction, edge list -> adjacency, layer stacking (mirrors GAT/Imp3).
# ----------------------------------------------------------------------------
def _xavier(key, shape, fan_in, fan_out):
    bound = (6.0 / (fan_in + fan_out)) ** 0.5
    return jax.random.uniform(key, shape, jnp.float32, -bound, bound)


def init_gat_params(key, num_of_layers, num_heads_per_layer, num_features_per_layer):
    heads = [1] + list(num_heads_per_layer)
    layers = []
    for i in range(num_of_layers):
        f_in = num_features_per_layer[i] * heads[i]
        f_out = num_features_per_layer[i + 1]
        h = heads[i + 1]
        concat = i < num_of_layers - 1
        apply_elu = i < num_of_layers - 1
        direct_skip = (f_out == f_in)

        key, k1, k2, k3, k4 = jax.random.split(key, 5)
        w_proj = _xavier(k1, (h * f_out, f_in), f_in, h * f_out)   # torch Linear weight
        a_src = _xavier(k2, (h, f_out), h * f_out, f_out)          # scoring_fn_source
        a_trg = _xavier(k3, (h, f_out), h * f_out, f_out)          # scoring_fn_target
        w_skip = _xavier(k4, (h * f_out, f_in), f_in, h * f_out)   # skip_proj weight
        bias = jnp.zeros((h * f_out,) if concat else (f_out,), jnp.float32)

        wproj_t = w_proj.T                                          # (f_in, h*f_out)
        wskip_t = w_skip.T

        # Fold per-head score reductions into (f_in, h) matrices:
        # s_src = x @ (Wproj_t @ Bsrc), s_trg = x @ (Wproj_t @ Btrg).
        b_src = jnp.zeros((h * f_out, h), jnp.float32)
        b_trg = jnp.zeros((h * f_out, h), jnp.float32)
        for hh in range(h):
            b_src = b_src.at[hh * f_out:(hh + 1) * f_out, hh].set(a_src[hh])
            b_trg = b_trg.at[hh * f_out:(hh + 1) * f_out, hh].set(a_trg[hh])
        w_src_fold = wproj_t @ b_src                                # (f_in, h)
        w_trg_fold = wproj_t @ b_trg                                # (f_in, h)

        # Augmented projection weights: [x | 1] @ w_aug -> per head [proj_h | 1]
        # (the ones column folds the softmax denominator into the MXU).
        fp = f_out + 1
        w_aug = jnp.zeros((f_in + 1, h * fp), jnp.float32)
        for hh in range(h):
            w_aug = w_aug.at[:f_in, hh * fp:hh * fp + f_out].set(
                wproj_t[:, hh * f_out:(hh + 1) * f_out])
            w_aug = w_aug.at[f_in, hh * fp + f_out].set(1.0)

        # Row-tile matmul weights: x_tile @ w_tile -> [s_trg | skip].
        if direct_skip:
            wskip_full = jnp.concatenate(
                [jnp.eye(f_in, dtype=jnp.float32)] * h, axis=1)     # += x per head
        else:
            wskip_full = wskip_t                                    # += skip_proj(x)
        w_tile = jnp.concatenate([w_trg_fold, wskip_full], axis=1)  # (f_in, h+h*f_out)

        out_dim = h * f_out if concat else f_out
        out_pad = _round_up(out_dim, 128)
        bias_pad = jnp.zeros((1, out_pad), jnp.float32).at[0, :out_dim].set(bias)

        layers.append(dict(
            wproj_t=wproj_t, wskip_t=wskip_t, a_src=a_src, a_trg=a_trg,
            w_src_fold=w_src_fold, w_aug=w_aug, w_tile=w_tile,
            bias=bias, bias_pad=bias_pad,
            num_heads=h, f_out=f_out, out_dim=out_dim, out_pad=out_pad,
            concat=concat, apply_elu=apply_elu, direct_skip=direct_skip))
    return layers


def gat_forward(x, edge_index, layers, *, block_rows=256):
    n = x.shape[0]
    # Dense adjacency mask (adj[trg, src] = 1 for each edge src -> trg), bf16.
    adj = jnp.zeros((n, n), jnp.bfloat16).at[edge_index[1], edge_index[0]].set(1.0)
    out = x
    for p in layers:
        out = gat_layer_pallas(out, adj, p, block_rows=block_rows)
    return out, edge_index


# ----------------------------------------------------------------------------
# Pure-JAX f32 reference (dense re-expression of GATLayerImp3, global max as
# in the PyTorch code) for a tolerance check.
# ----------------------------------------------------------------------------
def _gat_reference(x, edge_index, layers):
    n = x.shape[0]
    adj = jnp.zeros((n, n), jnp.float32).at[edge_index[1], edge_index[0]].set(1.0)
    mask = adj[:, :, None] > 0.5
    out = x
    for prm in layers:
        H, F = prm["num_heads"], prm["f_out"]
        proj = (out @ prm["wproj_t"]).reshape(n, H, F)
        s_src = jnp.einsum("nhf,hf->nh", proj, prm["a_src"])
        s_trg = jnp.einsum("nhf,hf->nh", proj, prm["a_trg"])
        e = s_trg[:, None, :] + s_src[None, :, :]                 # (trg, src, H)
        e = jnp.where(e > 0, e, 0.2 * e)
        e = jnp.where(mask, e, -jnp.inf)
        gmax = jnp.max(e)                                         # global edge max
        pex = jnp.where(mask, jnp.exp(e - gmax), 0.0)
        denom = pex.sum(axis=1, keepdims=True)
        alpha = pex / (denom + 1e-16)
        out_h = jnp.einsum("tsh,shf->thf", alpha, proj)           # (N, H, F)
        if prm["direct_skip"]:
            out_h = out_h + out[:, None, :]
        else:
            out_h = out_h + (out @ prm["wskip_t"]).reshape(n, H, F)
        if prm["concat"]:
            y = out_h.reshape(n, H * F) + prm["bias"]
        else:
            y = out_h.mean(axis=1) + prm["bias"]
        if prm["apply_elu"]:
            y = jnp.where(y > 0, y, jnp.exp(y) - 1.0)
        out = y
    return out


if __name__ == "__main__":
    # Small GAT: 2 layers, heads [4, 1], features [16, 8, 8] (Cora-style, tiny).
    num_of_layers = 2
    num_heads_per_layer = [4, 1]
    num_features_per_layer = [16, 8, 8]

    N = 32
    key = jax.random.PRNGKey(0)
    key, kx = jax.random.split(key)
    x = jax.random.normal(kx, (N, num_features_per_layer[0]), jnp.float32)

    # Deterministic edge list (2, E): each node receives edges from itself and
    # 3 fixed neighbors (no duplicate edges).
    src, trg = [], []
    for i in range(N):
        for d in (0, 1, 5, 11):
            src.append((i + d) % N)
            trg.append(i)
    edge_index = jnp.array([src, trg], dtype=jnp.int32)   # (2, 128)

    layers = init_gat_params(key, num_of_layers, num_heads_per_layer,
                             num_features_per_layer)

    # block_rows=16 -> 2 grid steps per layer at N=32 (exercises the tiling
    # and gives the "parallel" axis >= 2 steps).
    out, _ = gat_forward(x, edge_index, layers, block_rows=16)
    out = jax.block_until_ready(out)

    assert out.shape == (N, num_features_per_layer[-1])
    assert bool(jnp.all(jnp.isfinite(out)))

    # bf16 p / proj feeding the aggregation MXU loosens numerics slightly vs
    # the pure-f32 reference, hence the 2e-2 tolerance.
    ref = _gat_reference(x, edge_index, layers)
    err = float(jnp.max(jnp.abs(out - ref)))
    assert bool(jnp.allclose(out, ref, atol=2e-2, rtol=2e-2)), err

    print("KERNEL_OK")
</pallas_src>

<mosaic_0001>
module attributes {stable_mosaic.version = 11 : i64} {
  func.func @_gat_layer_kernel(%arg0: i32, %arg1: memref<16x32xbf16, #tpu.memory_space<vmem>>, %arg2: memref<32x17xf32, #tpu.memory_space<vmem>>, %arg3: memref<17x36xf32, #tpu.memory_space<vmem>>, %arg4: memref<4x32xf32, #tpu.memory_space<vmem>>, %arg5: memref<16x16xf32, #tpu.memory_space<vmem>>, %arg6: memref<16x36xf32, #tpu.memory_space<vmem>>, %arg7: memref<1x128xf32, #tpu.memory_space<vmem>>, %arg8: memref<16x128xf32, #tpu.memory_space<vmem>>) attributes {dimension_semantics = [#tpu.dimension_semantics<parallel>], iteration_bounds = array<i64: 2>, scalar_prefetch = 0 : i64, scratch_operands = 0 : i64, tpu.core_type = #tpu.core_type<tc>, window_params = [{transform_indices = @transform_0, window_bounds = array<i64: 16, 32>}, {pipeline_mode = #tpu.pipeline_mode<synchronous>, transform_indices = @transform_1, window_bounds = array<i64: 32, 17>}, {pipeline_mode = #tpu.pipeline_mode<synchronous>, transform_indices = @transform_2, window_bounds = array<i64: 17, 36>}, {pipeline_mode = #tpu.pipeline_mode<synchronous>, transform_indices = @transform_3, window_bounds = array<i64: 4, 32>}, {transform_indices = @transform_4, window_bounds = array<i64: 16, 16>}, {pipeline_mode = #tpu.pipeline_mode<synchronous>, transform_indices = @transform_5, window_bounds = array<i64: 16, 36>}, {pipeline_mode = #tpu.pipeline_mode<synchronous>, transform_indices = @transform_6, window_bounds = array<i64: 1, 128>}, {transform_indices = @transform_7, window_bounds = array<i64: 16, 128>}]} {
    %c0 = arith.constant 0 : index
    %c0_0 = arith.constant 0 : index
    %0 = vector.load %arg1[%c0, %c0_0] : memref<16x32xbf16, #tpu.memory_space<vmem>>, vector<16x32xbf16>
    %1 = arith.extf %0 : vector<16x32xbf16> to vector<16x32xf32>
    %cst = arith.constant 1.000000e+00 : f32
    %2 = vector.broadcast %cst : f32 to vector<16x32xf32>
    %3 = arith.subf %1, %2 : vector<16x32xf32>
    %cst_1 = arith.constant 1.000000e+30 : f32
    %4 = vector.broadcast %cst_1 : f32 to vector<16x32xf32>
    %5 = arith.mulf %3, %4 : vector<16x32xf32>
    %c0_2 = arith.constant 0 : index
    %c0_3 = arith.constant 0 : index
    %6 = vector.load %arg2[%c0_2, %c0_3] : memref<32x17xf32, #tpu.memory_space<vmem>>, vector<32x17xf32>
    %c0_4 = arith.constant 0 : index
    %c0_5 = arith.constant 0 : index
    %7 = vector.load %arg3[%c0_4, %c0_5] : memref<17x36xf32, #tpu.memory_space<vmem>>, vector<17x36xf32>
    %cst_6 = arith.constant dense<0.000000e+00> : vector<32x36xf32>
    %8 = tpu.matmul %6, %7, %cst_6 {dimension_numbers = #tpu.dot_dimension_numbers<[1], [0], [0], [1], [0, 0, 1, 1], [], []>} : vector<32x17xf32>, vector<17x36xf32>, vector<32x36xf32> -> vector<32x36xf32>
    %9 = arith.truncf %8 : vector<32x36xf32> to vector<32x36xbf16>
    %c0_7 = arith.constant 0 : index
    %c0_8 = arith.constant 0 : index
    %10 = vector.load %arg5[%c0_7, %c0_8] : memref<16x16xf32, #tpu.memory_space<vmem>>, vector<16x16xf32>
    %c0_9 = arith.constant 0 : index
    %c0_10 = arith.constant 0 : index
    %11 = vector.load %arg6[%c0_9, %c0_10] : memref<16x36xf32, #tpu.memory_space<vmem>>, vector<16x36xf32>
    %cst_11 = arith.constant dense<0.000000e+00> : vector<16x36xf32>
    %12 = tpu.matmul %10, %11, %cst_11 {dimension_numbers = #tpu.dot_dimension_numbers<[1], [0], [0], [1], [0, 0, 1, 1], [], []>} : vector<16x16xf32>, vector<16x36xf32>, vector<16x36xf32> -> vector<16x36xf32>
    %13 = vector.extract_strided_slice %12 {offsets = [0, 0], sizes = [16, 4], strides = [1, 1]} : vector<16x36xf32> to vector<16x4xf32>
    %14 = vector.extract_strided_slice %12 {offsets = [0, 4], sizes = [16, 32], strides = [1, 1]} : vector<16x36xf32> to vector<16x32xf32>
    %c0_12 = arith.constant 0 : index
    %c0_13 = arith.constant 0 : index
    %15 = vector.load %arg4[%c0_12, %c0_13] : memref<4x32xf32, #tpu.memory_space<vmem>>, vector<4x32xf32>
    %16 = vector.extract_strided_slice %13 {offsets = [0, 0], sizes = [16, 1], strides = [1, 1]} : vector<16x4xf32> to vector<16x1xf32>
    %17 = vector.extract_strided_slice %15 {offsets = [0, 0], sizes = [1, 32], strides = [1, 1]} : vector<4x32xf32> to vector<1x32xf32>
    %18 = vector.broadcast %16 : vector<16x1xf32> to vector<16x32xf32>
    %19 = vector.broadcast %17 : vector<1x32xf32> to vector<16x32xf32>
    %20 = arith.addf %18, %19 : vector<16x32xf32>
    %cst_14 = arith.constant 2.000000e-01 : f32
    %21 = vector.broadcast %cst_14 : f32 to vector<16x32xf32>
    %22 = arith.mulf %21, %20 : vector<16x32xf32>
    %23 = arith.maximumf %20, %22 : vector<16x32xf32>
    %24 = arith.addf %23, %5 : vector<16x32xf32>
    %cst_15 = arith.constant dense<0xFF800000> : vector<16xf32>
    %25 = vector.multi_reduction <maximumf>, %24, %cst_15 [1] : vector<16x32xf32> to vector<16xf32>
    %26 = vector.shape_cast %25 : vector<16xf32> to vector<16x1xf32>
    %cst_16 = arith.constant 0.000000e+00 : f32
    %27 = vector.broadcast %cst_16 : f32 to vector<16x1xf32>
    %28 = arith.maximumf %26, %27 : vector<16x1xf32>
    %29 = vector.broadcast %28 : vector<16x1xf32> to vector<16x32xf32>
    %30 = arith.subf %24, %29 : vector<16x32xf32>
    %31 = math.exp %30 : vector<16x32xf32>
    %32 = arith.truncf %31 : vector<16x32xf32> to vector<16x32xbf16>
    %33 = vector.extract_strided_slice %9 {offsets = [0, 0], sizes = [32, 9], strides = [1, 1]} : vector<32x36xbf16> to vector<32x9xbf16>
    %cst_17 = arith.constant dense<0.000000e+00> : vector<16x9xf32>
    %34 = tpu.matmul %32, %33, %cst_17 {dimension_numbers = #tpu.dot_dimension_numbers<[1], [0], [0], [1], [0, 0, 1, 1], [], []>} : vector<16x32xbf16>, vector<32x9xbf16>, vector<16x9xf32> -> vector<16x9xf32>
    %35 = vector.extract_strided_slice %34 {offsets = [0, 8], sizes = [16, 1], strides = [1, 1]} : vector<16x9xf32> to vector<16x1xf32>
    %cst_18 = arith.constant 1.000000e-16 : f32
    %36 = vector.broadcast %cst_18 : f32 to vector<16x1xf32>
    %37 = arith.addf %35, %36 : vector<16x1xf32>
    %38 = tpu.reciprocal %37 {approx = true} : vector<16x1xf32> -> vector<16x1xf32>
    %39 = vector.extract_strided_slice %34 {offsets = [0, 0], sizes = [16, 8], strides = [1, 1]} : vector<16x9xf32> to vector<16x8xf32>
    %40 = vector.broadcast %38 : vector<16x1xf32> to vector<16x8xf32>
    %41 = arith.mulf %39, %40 : vector<16x8xf32>
    %42 = vector.extract_strided_slice %14 {offsets = [0, 0], sizes = [16, 8], strides = [1, 1]} : vector<16x32xf32> to vector<16x8xf32>
    %43 = arith.addf %41, %42 : vector<16x8xf32>
    %44 = vector.extract_strided_slice %13 {offsets = [0, 1], sizes = [16, 1], strides = [1, 1]} : vector<16x4xf32> to vector<16x1xf32>
    %45 = vector.extract_strided_slice %15 {offsets = [1, 0], sizes = [1, 32], strides = [1, 1]} : vector<4x32xf32> to vector<1x32xf32>
    %46 = vector.broadcast %44 : vector<16x1xf32> to vector<16x32xf32>
    %47 = vector.broadcast %45 : vector<1x32xf32> to vector<16x32xf32>
    %48 = arith.addf %46, %47 : vector<16x32xf32>
    %cst_19 = arith.constant 2.000000e-01 : f32
    %49 = vector.broadcast %cst_19 : f32 to vector<16x32xf32>
    %50 = arith.mulf %49, %48 : vector<16x32xf32>
    %51 = arith.maximumf %48, %50 : vector<16x32xf32>
    %52 = arith.addf %51, %5 : vector<16x32xf32>
    %cst_20 = arith.constant dense<0xFF800000> : vector<16xf32>
    %53 = vector.multi_reduction <maximumf>, %52, %cst_20 [1] : vector<16x32xf32> to vector<16xf32>
    %54 = vector.shape_cast %53 : vector<16xf32> to vector<16x1xf32>
    %cst_21 = arith.constant 0.000000e+00 : f32
    %55 = vector.broadcast %cst_21 : f32 to vector<16x1xf32>
    %56 = arith.maximumf %54, %55 : vector<16x1xf32>
    %57 = vector.broadcast %56 : vector<16x1xf32> to vector<16x32xf32>
    %58 = arith.subf %52, %57 : vector<16x32xf32>
    %59 = math.exp %58 : vector<16x32xf32>
    %60 = arith.truncf %59 : vector<16x32xf32> to vector<16x32xbf16>
    %61 = vector.extract_strided_slice %9 {offsets = [0, 9], sizes = [32, 9], strides = [1, 1]} : vector<32x36xbf16> to vector<32x9xbf16>
    %cst_22 = arith.constant dense<0.000000e+00> : vector<16x9xf32>
    %62 = tpu.matmul %60, %61, %cst_22 {dimension_numbers = #tpu.dot_dimension_numbers<[1], [0], [0], [1], [0, 0, 1, 1], [], []>} : vector<16x32xbf16>, vector<32x9xbf16>, vector<16x9xf32> -> vector<16x9xf32>
    %63 = vector.extract_strided_slice %62 {offsets = [0, 8], sizes = [16, 1], strides = [1, 1]} : vector<16x9xf32> to vector<16x1xf32>
    %cst_23 = arith.constant 1.000000e-16 : f32
    %64 = vector.broadcast %cst_23 : f32 to vector<16x1xf32>
    %65 = arith.addf %63, %64 : vector<16x1xf32>
    %66 = tpu.reciprocal %65 {approx = true} : vector<16x1xf32> -> vector<16x1xf32>
    %67 = vector.extract_strided_slice %62 {offsets = [0, 0], sizes = [16, 8], strides = [1, 1]} : vector<16x9xf32> to vector<16x8xf32>
    %68 = vector.broadcast %66 : vector<16x1xf32> to vector<16x8xf32>
    %69 = arith.mulf %67, %68 : vector<16x8xf32>
    %70 = vector.extract_strided_slice %14 {offsets = [0, 8], sizes = [16, 8], strides = [1, 1]} : vector<16x32xf32> to vector<16x8xf32>
    %71 = arith.addf %69, %70 : vector<16x8xf32>
    %72 = vector.extract_strided_slice %13 {offsets = [0, 2], sizes = [16, 1], strides = [1, 1]} : vector<16x4xf32> to vector<16x1xf32>
    %73 = vector.extract_strided_slice %15 {offsets = [2, 0], sizes = [1, 32], strides = [1, 1]} : vector<4x32xf32> to vector<1x32xf32>
    %74 = vector.broadcast %72 : vector<16x1xf32> to vector<16x32xf32>
    %75 = vector.broadcast %73 : vector<1x32xf32> to vector<16x32xf32>
    %76 = arith.addf %74, %75 : vector<16x32xf32>
    %cst_24 = arith.constant 2.000000e-01 : f32
    %77 = vector.broadcast %cst_24 : f32 to vector<16x32xf32>
    %78 = arith.mulf %77, %76 : vector<16x32xf32>
    %79 = arith.maximumf %76, %78 : vector<16x32xf32>
    %80 = arith.addf %79, %5 : vector<16x32xf32>
    %cst_25 = arith.constant dense<0xFF800000> : vector<16xf32>
    %81 = vector.multi_reduction <maximumf>, %80, %cst_25 [1] : vector<16x32xf32> to vector<16xf32>
    %82 = vector.shape_cast %81 : vector<16xf32> to vector<16x1xf32>
    %cst_26 = arith.constant 0.000000e+00 : f32
    %83 = vector.broadcast %cst_26 : f32 to vector<16x1xf32>
    %84 = arith.maximumf %82, %83 : vector<16x1xf32>
    %85 = vector.broadcast %84 : vector<16x1xf32> to vector<16x32xf32>
    %86 = arith.subf %80, %85 : vector<16x32xf32>
    %87 = math.exp %86 : vector<16x32xf32>
    %88 = arith.truncf %87 : vector<16x32xf32> to vector<16x32xbf16>
    %89 = vector.extract_strided_slice %9 {offsets = [0, 18], sizes = [32, 9], strides = [1, 1]} : vector<32x36xbf16> to vector<32x9xbf16>
    %cst_27 = arith.constant dense<0.000000e+00> : vector<16x9xf32>
    %90 = tpu.matmul %88, %89, %cst_27 {dimension_numbers = #tpu.dot_dimension_numbers<[1], [0], [0], [1], [0, 0, 1, 1], [], []>} : vector<16x32xbf16>, vector<32x9xbf16>, vector<16x9xf32> -> vector<16x9xf32>
    %91 = vector.extract_strided_slice %90 {offsets = [0, 8], sizes = [16, 1], strides = [1, 1]} : vector<16x9xf32> to vector<16x1xf32>
    %cst_28 = arith.constant 1.000000e-16 : f32
    %92 = vector.broadcast %cst_28 : f32 to vector<16x1xf32>
    %93 = arith.addf %91, %92 : vector<16x1xf32>
    %94 = tpu.reciprocal %93 {approx = true} : vector<16x1xf32> -> vector<16x1xf32>
    %95 = vector.extract_strided_slice %90 {offsets = [0, 0], sizes = [16, 8], strides = [1, 1]} : vector<16x9xf32> to vector<16x8xf32>
    %96 = vector.broadcast %94 : vector<16x1xf32> to vector<16x8xf32>
    %97 = arith.mulf %95, %96 : vector<16x8xf32>
    %98 = vector.extract_strided_slice %14 {offsets = [0, 16], sizes = [16, 8], strides = [1, 1]} : vector<16x32xf32> to vector<16x8xf32>
    %99 = arith.addf %97, %98 : vector<16x8xf32>
    %100 = vector.extract_strided_slice %13 {offsets = [0, 3], sizes = [16, 1], strides = [1, 1]} : vector<16x4xf32> to vector<16x1xf32>
    %101 = vector.extract_strided_slice %15 {offsets = [3, 0], sizes = [1, 32], strides = [1, 1]} : vector<4x32xf32> to vector<1x32xf32>
    %102 = vector.broadcast %100 : vector<16x1xf32> to vector<16x32xf32>
    %103 = vector.broadcast %101 : vector<1x32xf32> to vector<16x32xf32>
    %104 = arith.addf %102, %103 : vector<16x32xf32>
    %cst_29 = arith.constant 2.000000e-01 : f32
    %105 = vector.broadcast %cst_29 : f32 to vector<16x32xf32>
    %106 = arith.mulf %105, %104 : vector<16x32xf32>
    %107 = arith.maximumf %104, %106 : vector<16x32xf32>
    %108 = arith.addf %107, %5 : vector<16x32xf32>
    %cst_30 = arith.constant dense<0xFF800000> : vector<16xf32>
    %109 = vector.multi_reduction <maximumf>, %108, %cst_30 [1] : vector<16x32xf32> to vector<16xf32>
    %110 = vector.shape_cast %109 : vector<16xf32> to vector<16x1xf32>
    %cst_31 = arith.constant 0.000000e+00 : f32
    %111 = vector.broadcast %cst_31 : f32 to vector<16x1xf32>
    %112 = arith.maximumf %110, %111 : vector<16x1xf32>
    %113 = vector.broadcast %112 : vector<16x1xf32> to vector<16x32xf32>
    %114 = arith.subf %108, %113 : vector<16x32xf32>
    %115 = math.exp %114 : vector<16x32xf32>
    %116 = arith.truncf %115 : vector<16x32xf32> to vector<16x32xbf16>
    %117 = vector.extract_strided_slice %9 {offsets = [0, 27], sizes = [32, 9], strides = [1, 1]} : vector<32x36xbf16> to vector<32x9xbf16>
    %cst_32 = arith.constant dense<0.000000e+00> : vector<16x9xf32>
    %118 = tpu.matmul %116, %117, %cst_32 {dimension_numbers = #tpu.dot_dimension_numbers<[1], [0], [0], [1], [0, 0, 1, 1], [], []>} : vector<16x32xbf16>, vector<32x9xbf16>, vector<16x9xf32> -> vector<16x9xf32>
    %119 = vector.extract_strided_slice %118 {offsets = [0, 8], sizes = [16, 1], strides = [1, 1]} : vector<16x9xf32> to vector<16x1xf32>
    %cst_33 = arith.constant 1.000000e-16 : f32
    %120 = vector.broadcast %cst_33 : f32 to vector<16x1xf32>
    %121 = arith.addf %119, %120 : vector<16x1xf32>
    %122 = tpu.reciprocal %121 {approx = true} : vector<16x1xf32> -> vector<16x1xf32>
    %123 = vector.extract_strided_slice %118 {offsets = [0, 0], sizes = [16, 8], strides = [1, 1]} : vector<16x9xf32> to vector<16x8xf32>
    %124 = vector.broadcast %122 : vector<16x1xf32> to vector<16x8xf32>
    %125 = arith.mulf %123, %124 : vector<16x8xf32>
    %126 = vector.extract_strided_slice %14 {offsets = [0, 24], sizes = [16, 8], strides = [1, 1]} : vector<16x32xf32> to vector<16x8xf32>
    %127 = arith.addf %125, %126 : vector<16x8xf32>
    %128 = tpu.concatenate %43, %71, %99, %127 in 1 : vector<16x8xf32>, vector<16x8xf32>, vector<16x8xf32>, vector<16x8xf32> -> vector<16x32xf32>
    %cst_34 = arith.constant 0.000000e+00 : f32
    %129 = vector.broadcast %cst_34 : f32 to vector<16x96xf32>
    %130 = tpu.concatenate %128, %129 in 1 : vector<16x32xf32>, vector<16x96xf32> -> vector<16x128xf32>
    %c0_35 = arith.constant 0 : index
    %c0_36 = arith.constant 0 : index
    %131 = vector.load %arg7[%c0_35, %c0_36] : memref<1x128xf32, #tpu.memory_space<vmem>>, vector<1x128xf32>
    %132 = vector.broadcast %131 : vector<1x128xf32> to vector<16x128xf32>
    %133 = arith.addf %130, %132 : vector<16x128xf32>
    %cst_37 = arith.constant 0.000000e+00 : f32
    %134 = vector.broadcast %cst_37 : f32 to vector<16x128xf32>
    %135 = arith.cmpf ogt, %133, %134 : vector<16x128xf32>
    %136 = math.exp %133 : vector<16x128xf32>
    %cst_38 = arith.constant 1.000000e+00 : f32
    %137 = vector.broadcast %cst_38 : f32 to vector<16x128xf32>
    %138 = arith.subf %136, %137 : vector<16x128xf32>
    %139 = arith.select %135, %133, %138 : vector<16x128xi1>, vector<16x128xf32>
    %c0_39 = arith.constant 0 : index
    %c0_40 = arith.constant 0 : index
    %140 = vector.load %arg8[%c0_39, %c0_40] : memref<16x128xf32, #tpu.memory_space<vmem>>, vector<16x128xf32>
    tpu.vector_store %arg8[%c0_39, %c0_40], %139 {strides = array<i32>} : memref<16x128xf32, #tpu.memory_space<vmem>>, vector<16x128xf32>,
    return
  }
  func.func @transform_0(%arg0: i32) -> (i32, i32) {
    %c0_i32 = arith.constant 0 : i32
    %c0_i32_0 = arith.constant 0 : i32
    return %arg0, %c0_i32 : i32, i32
  }
  func.func @transform_1(%arg0: i32) -> (i32, i32) {
    %c0_i32 = arith.constant 0 : i32
    %c0_i32_0 = arith.constant 0 : i32
    %c0_i32_1 = arith.constant 0 : i32
    return %c0_i32, %c0_i32_0 : i32, i32
  }
  func.func @transform_2(%arg0: i32) -> (i32, i32) {
    %c0_i32 = arith.constant 0 : i32
    %c0_i32_0 = arith.constant 0 : i32
    %c0_i32_1 = arith.constant 0 : i32
    return %c0_i32, %c0_i32_0 : i32, i32
  }
  func.func @transform_3(%arg0: i32) -> (i32, i32) {
    %c0_i32 = arith.constant 0 : i32
    %c0_i32_0 = arith.constant 0 : i32
    %c0_i32_1 = arith.constant 0 : i32
    return %c0_i32, %c0_i32_0 : i32, i32
  }
  func.func @transform_4(%arg0: i32) -> (i32, i32) {
    %c0_i32 = arith.constant 0 : i32
    %c0_i32_0 = arith.constant 0 : i32
    return %arg0, %c0_i32 : i32, i32
  }
  func.func @transform_5(%arg0: i32) -> (i32, i32) {
    %c0_i32 = arith.constant 0 : i32
    %c0_i32_0 = arith.constant 0 : i32
    %c0_i32_1 = arith.constant 0 : i32
    return %c0_i32, %c0_i32_0 : i32, i32
  }
  func.func @transform_6(%arg0: i32) -> (i32, i32) {
    %c0_i32 = arith.constant 0 : i32
    %c0_i32_0 = arith.constant 0 : i32
    %c0_i32_1 = arith.constant 0 : i32
    return %c0_i32, %c0_i32_0 : i32, i32
  }
  func.func @transform_7(%arg0: i32) -> (i32, i32) {
    %c0_i32 = arith.constant 0 : i32
    %c0_i32_0 = arith.constant 0 : i32
    return %arg0, %c0_i32 : i32, i32
  }
}

</mosaic_0001>

<llo_original>
// kernel: tpu_custom_call.1
$region0: #{tpu_custom_call.1}
  #allocation0 [shape = 'u32[]', space=smem, size = 0x4, offset = 0x4, fixed_abs, tag = 'smem constant byte address 0x4 - core index']
  #allocation1 [shape = 'u32[144,128]{1,0:T(1,128)}', space=vmem, size = 0x12000, scoped, tag = 'internal scratch']
  %s0 = inlined_call_operand.vmem [shape: bf16[32,32], index: 0, kind: input, shape index: {}]
  %s1 = inlined_call_operand.vmem [shape: f32[32,17], index: 1, kind: input, shape index: {}]
  %s2 = inlined_call_operand.vmem [shape: f32[17,36], index: 2, kind: input, shape index: {}]
  %s3 = inlined_call_operand.vmem [shape: f32[4,32], index: 3, kind: input, shape index: {}]
  %s4 = inlined_call_operand.vmem [shape: f32[32,16], index: 4, kind: input, shape index: {}]
  %s5 = inlined_call_operand.vmem [shape: f32[16,36], index: 5, kind: input, shape index: {}]
  %s6 = inlined_call_operand.vmem [shape: f32[1,128], index: 6, kind: input, shape index: {}]
  %s7 = inlined_call_operand.hbm [shape: f32[32,128], index: 7, kind: output, shape index: {}]
  %s8 = sld [smem:[#allocation0]]
  $region61: #{tpu_custom_call.1} parent=0
    _
  %s10 = ssub.s32 1, %s8
  %s11 = scalar_select 0, %s10, %s8
  $region1: #{tpu_custom_call.1} parent=0
    #allocation2 [shape = 'u8[16384]{0}', space=vmem, size = 0x4000, scoped, tag = 'output window, operand 0']
    #allocation3 [shape = 's32[2]{0}', space=sflag, size = 0x8, scoped, tag = 'scoped memory for tpu_custom_call.1']
    %12 = vsyncpa [#allocation3], 0
    %s13 = scalar_lea.sflag [#allocation3], 1
    %14 = vsyncpa %s13, 0
    loop: start=0, step=1, limit=4
    $region2: #{tpu_custom_call.1} parent=1 // loop_pre_header
      _
    $region3: #{tpu_custom_call.1} parent=1 // loop_header
      %s16 = sphi 0, %s20
      %p17 = scmp.ge.s32.totalorder %s16, 4
      %s26 = sphi 0, %s28
      %s29 = sphi 0, %s26
      %s30 = sphi 0, %s29
      %s46 = sphi 0, %s30
      %s50 = sphi 0, %s50
      %s52 = sphi 0, %s50
      %s53 = sphi 0, %s52
      %s67 = sphi 0, %s53
      %s71 = sphi 0, %s71
      %s73 = sphi 0, %s71
      %s74 = sphi 0, %s73
      %s88 = sphi 0, %s74
      %s92 = sphi 0, %s92
      %s94 = sphi 0, %s92
      %s95 = sphi 0, %s94
      %s109 = sphi 0, %s95
      %s115 = sphi 0, %s117
      %s118 = sphi 0, %s115
      %s119 = sphi 0, %s118
      %s135 = sphi 0, %s119
      %s139 = sphi 0, %s139
      %s141 = sphi 0, %s139
      %s142 = sphi 0, %s141
      %s156 = sphi 0, %s142
      %s160 = sphi 0, %s160
      %s162 = sphi 0, %s160
      %s163 = sphi 0, %s162
      %s177 = sphi 0, %s163
      %s183 = sphi 0, %s185
      %s186 = sphi 0, %s183
      %s187 = sphi 0, %s186
      %s203 = sphi 0, %s187
    $region4: #{tpu_custom_call.1} parent=1 // loop_header_branch
      %19 = sbr.rel (%p17) target = $region8
    $region5: #{tpu_custom_call.1} parent=1 // loop_body
      %s21 = ssub.s32 %s16, 1
      %s22 = ssub.s32 %s16, 2
      %s23 = sadd.s32 %s16, 1
      %s24 = ssub.s32 %s16, %s23
      %p25 = scmp.eq.s32.totalorder %s24, 0
      %s27 = sadd.s32 %s26, 1
      %s28 = scalar_select %p25, %s26, %s27
      %p31 = pneg %p25
      %p32 = scmp.eq.s32.totalorder %s16, 1
      %p33 = por %p31, %p32
      %p34 = scmp.ne.s32.totalorder %s26, %s29
      %p35 = scmp.eq.s32.totalorder %s16, 0
      %p36 = por %p34, %p35
      %p37 = scmp.ne.s32.totalorder %s26, %s29
      %p38 = scmp.eq.s32.totalorder %s21, 1
      %p39 = por %p37, %p38
      %p40 = scmp.ne.s32.totalorder %s29, %s30
      %p41 = scmp.eq.s32.totalorder %s21, 0
      %p42 = por %p40, %p41
      %p43 = scmp.ne.s32.totalorder %s29, %s30
      %p44 = scmp.eq.s32.totalorder %s22, 1
      %p45 = por %p43, %p44
      %p47 = scmp.ne.s32.totalorder %s30, %s46
      %p48 = scmp.eq.s32.totalorder %s22, 0
      %p49 = por %p47, %p48
      %s51 = sadd.s32 %s50, 1
      %p54 = scmp.eq.s32.totalorder %s16, 1
      %p55 = scmp.ne.s32.totalorder %s50, %s52
      %p56 = scmp.eq.s32.totalorder %s16, 0
      %p57 = por %p55, %p56
      %p58 = scmp.ne.s32.totalorder %s50, %s52
      %p59 = scmp.eq.s32.totalorder %s21, 1
      %p60 = por %p58, %p59
      %p61 = scmp.ne.s32.totalorder %s52, %s53
      %p62 = scmp.eq.s32.totalorder %s21, 0
      %p63 = por %p61, %p62
      %p64 = scmp.ne.s32.totalorder %s52, %s53
      %p65 = scmp.eq.s32.totalorder %s22, 1
      %p66 = por %p64, %p65
      %p68 = scmp.ne.s32.totalorder %s53, %s67
      %p69 = scmp.eq.s32.totalorder %s22, 0
      %p70 = por %p68, %p69
      %s72 = sadd.s32 %s71, 1
      %p75 = scmp.eq.s32.totalorder %s16, 1
      %p76 = scmp.ne.s32.totalorder %s71, %s73
      %p77 = scmp.eq.s32.totalorder %s16, 0
      %p78 = por %p76, %p77
      %p79 = scmp.ne.s32.totalorder %s71, %s73
      %p80 = scmp.eq.s32.totalorder %s21, 1
      %p81 = por %p79, %p80
      %p82 = scmp.ne.s32.totalorder %s73, %s74
      %p83 = scmp.eq.s32.totalorder %s21, 0
      %p84 = por %p82, %p83
      %p85 = scmp.ne.s32.totalorder %s73, %s74
      %p86 = scmp.eq.s32.totalorder %s22, 1
      %p87 = por %p85, %p86
      %p89 = scmp.ne.s32.totalorder %s74, %s88
      %p90 = scmp.eq.s32.totalorder %s22, 0
      %p91 = por %p89, %p90
      %s93 = sadd.s32 %s92, 1
      %p96 = scmp.eq.s32.totalorder %s16, 1
      %p97 = scmp.ne.s32.totalorder %s92, %s94
      %p98 = scmp.eq.s32.totalorder %s16, 0
      %p99 = por %p97, %p98
      %p100 = scmp.ne.s32.totalorder %s92, %s94
      %p101 = scmp.eq.s32.totalorder %s21, 1
      %p102 = por %p100, %p101
      %p103 = scmp.ne.s32.totalorder %s94, %s95
      %p104 = scmp.eq.s32.totalorder %s21, 0
      %p105 = por %p103, %p104
      %p106 = scmp.ne.s32.totalorder %s94, %s95
      %p107 = scmp.eq.s32.totalorder %s22, 1
      %p108 = por %p106, %p107
      %p110 = scmp.ne.s32.totalorder %s95, %s109
      %p111 = scmp.eq.s32.totalorder %s22, 0
      %p112 = por %p110, %p111
      %s113 = ssub.s32 %s16, %s23
      %p114 = scmp.eq.s32.totalorder %s113, 0
      %s116 = sadd.s32 %s115, 1
      %s117 = scalar_select %p114, %s115, %s116
      %p120 = pneg %p114
      %p121 = scmp.eq.s32.totalorder %s16, 1
      %p122 = por %p120, %p121
      %p123 = scmp.ne.s32.totalorder %s115, %s118
      %p124 = scmp.eq.s32.totalorder %s16, 0
      %p125 = por %p123, %p124
      %p126 = scmp.ne.s32.totalorder %s115, %s118
      %p127 = scmp.eq.s32.totalorder %s21, 1
      %p128 = por %p126, %p127
      %p129 = scmp.ne.s32.totalorder %s118, %s119
      %p130 = scmp.eq.s32.totalorder %s21, 0
      %p131 = por %p129, %p130
      %p132 = scmp.ne.s32.totalorder %s118, %s119
      %p133 = scmp.eq.s32.totalorder %s22, 1
      %p134 = por %p132, %p133
      %p136 = scmp.ne.s32.totalorder %s119, %s135
      %p137 = scmp.eq.s32.totalorder %s22, 0
      %p138 = por %p136, %p137
      %s140 = sadd.s32 %s139, 1
      %p143 = scmp.eq.s32.totalorder %s16, 1
      %p144 = scmp.ne.s32.totalorder %s139, %s141
      %p145 = scmp.eq.s32.totalorder %s16, 0
      %p146 = por %p144, %p145
      %p147 = scmp.ne.s32.totalorder %s139, %s141
      %p148 = scmp.eq.s32.totalorder %s21, 1
      %p149 = por %p147, %p148
      %p150 = scmp.ne.s32.totalorder %s141, %s142
      %p151 = scmp.eq.s32.totalorder %s21, 0
      %p152 = por %p150, %p151
      %p153 = scmp.ne.s32.totalorder %s141, %s142
      %p154 = scmp.eq.s32.totalorder %s22, 1
      %p155 = por %p153, %p154
      %p157 = scmp.ne.s32.totalorder %s142, %s156
      %p158 = scmp.eq.s32.totalorder %s22, 0
      %p159 = por %p157, %p158
      %s161 = sadd.s32 %s160, 1
      %p164 = scmp.eq.s32.totalorder %s16, 1
      %p165 = scmp.ne.s32.totalorder %s160, %s162
      %p166 = scmp.eq.s32.totalorder %s16, 0
      %p167 = por %p165, %p166
      %p168 = scmp.ne.s32.totalorder %s160, %s162
      %p169 = scmp.eq.s32.totalorder %s21, 1
      %p170 = por %p168, %p169
      %p171 = scmp.ne.s32.totalorder %s162, %s163
      %p172 = scmp.eq.s32.totalorder %s21, 0
      %p173 = por %p171, %p172
      %p174 = scmp.ne.s32.totalorder %s162, %s163
      %p175 = scmp.eq.s32.totalorder %s22, 1
      %p176 = por %p174, %p175
      %p178 = scmp.ne.s32.totalorder %s163, %s177
      %p179 = scmp.eq.s32.totalorder %s22, 0
      %p180 = por %p178, %p179
      %s181 = ssub.s32 %s16, %s23
      %p182 = scmp.eq.s32.totalorder %s181, 0
      %s184 = sadd.s32 %s183, 1
      %s185 = scalar_select %p182, %s183, %s184
      %p188 = pneg %p182
      %p189 = scmp.eq.s32.totalorder %s16, 1
      %p190 = por %p188, %p189
      %p191 = scmp.ne.s32.totalorder %s183, %s186
      %p192 = scmp.eq.s32.totalorder %s16, 0
      %p193 = por %p191, %p192
      %p194 = scmp.ne.s32.totalorder %s183, %s186
      %p195 = scmp.eq.s32.totalorder %s21, 1
      %p196 = por %p194, %p195
      %p197 = scmp.ne.s32.totalorder %s186, %s187
      %p198 = scmp.eq.s32.totalorder %s21, 0
      %p199 = por %p197, %p198
      %p200 = scmp.ne.s32.totalorder %s186, %s187
      %p201 = scmp.eq.s32.totalorder %s22, 1
      %p202 = por %p200, %p201
      %p204 = scmp.ne.s32.totalorder %s187, %s203
      %p205 = scmp.eq.s32.totalorder %s22, 0
      %p206 = por %p204, %p205
      %p207 = scmp.le.s32.totalorder 1, %s16
      %p208 = scmp.lt.s32.totalorder %s16, 3
      %p209 = pnand %p207, %p208
      %p210 = pneg %p209
      // Predicated region
      $region9: #{tpu_custom_call.1} parent=5 // pred_check
        _
      $region10: #{tpu_custom_call.1} parent=5 // pred_check_branch
        %212 = sbr.rel (%p209) target = $region12
      $region11: #{tpu_custom_call.1} parent=5 // pred_region
        %s213 = ssub.s32 %s16, 1
        // Predicated region
        $region13: #{tpu_custom_call.1} parent=11 // pred_check
          %p214 = pneg %p63
        $region14: #{tpu_custom_call.1} parent=11 // pred_check_branch
          %216 = sbr.rel (%p214) target = $region16
        $region15: #{tpu_custom_call.1} parent=11 // pred_region
          _
        $region16: #{tpu_custom_call.1} parent=11 // pred_fallthru
          _
        // Predicated region
        $region17: #{tpu_custom_call.1} parent=11 // pred_check
          %p217 = pneg %p84
        $region18: #{tpu_custom_call.1} parent=11 // pred_check_branch
          %219 = sbr.rel (%p217) target = $region20
        $region19: #{tpu_custom_call.1} parent=11 // pred_region
          _
        $region20: #{tpu_custom_call.1} parent=11 // pred_fallthru
          _
        // Predicated region
        $region21: #{tpu_custom_call.1} parent=11 // pred_check
          %p220 = pneg %p105
        $region22: #{tpu_custom_call.1} parent=11 // pred_check_branch
          %222 = sbr.rel (%p220) target = $region24
        $region23: #{tpu_custom_call.1} parent=11 // pred_region
          _
        $region24: #{tpu_custom_call.1} parent=11 // pred_fallthru
          _
        // Predicated region
        $region25: #{tpu_custom_call.1} parent=11 // pred_check
          %p223 = pneg %p152
        $region26: #{tpu_custom_call.1} parent=11 // pred_check_branch
          %225 = sbr.rel (%p223) target = $region28
        $region27: #{tpu_custom_call.1} parent=11 // pred_region
          _
        $region28: #{tpu_custom_call.1} parent=11 // pred_fallthru
          _
        // Predicated region
        $region29: #{tpu_custom_call.1} parent=11 // pred_check
          %p226 = pneg %p173
        $region30: #{tpu_custom_call.1} parent=11 // pred_check_branch
          %228 = sbr.rel (%p226) target = $region32
        $region31: #{tpu_custom_call.1} parent=11 // pred_region
          _
        $region32: #{tpu_custom_call.1} parent=11 // pred_fallthru
          _
      $region12: #{tpu_custom_call.1} parent=5 // pred_fallthru
        _
      %p229 = scmp.lt.s32.totalorder %s16, 2
      // Predicated region
      $region33: #{tpu_custom_call.1} parent=5 // pred_check
        %p230 = pneg %p229
      $region34: #{tpu_custom_call.1} parent=5 // pred_check_branch
        %232 = sbr.rel (%p230) target = $region36
      $region35: #{tpu_custom_call.1} parent=5 // pred_region
        // Predicated region
        $region37: #{tpu_custom_call.1} parent=35 // pred_check
          %p233 = pneg %p36
        $region38: #{tpu_custom_call.1} parent=35 // pred_check_branch
          %235 = sbr.rel (%p233) target = $region40
        $region39: #{tpu_custom_call.1} parent=35 // pred_region
          %s236 = smul.u32 2, %s16
          %p237 = scmp.lt.s32.totalorder %s236, 3
          %s238 = scalar_select %p237, %s236, 3
          %s239 = smul.addr %s238, 4
          %s240 = scalar_lea.vmem %s0, %s239
          %s241 = smul.u32 2, %s16
        $region40: #{tpu_custom_call.1} parent=35 // pred_fallthru
          _
        // Predicated region
        $region41: #{tpu_custom_call.1} parent=35 // pred_check
          %p242 = pneg %p125
        $region42: #{tpu_custom_call.1} parent=35 // pred_check_branch
          %244 = sbr.rel (%p242) target = $region44
        $region43: #{tpu_custom_call.1} parent=35 // pred_region
          %s245 = smul.u32 2, %s16
          %p246 = scmp.lt.s32.totalorder %s245, 3
          %s247 = scalar_select %p246, %s245, 3
          %s248 = smul.addr %s247, 8
          %s249 = scalar_lea.vmem %s4, %s248
          %s250 = smul.u32 2, %s16
        $region44: #{tpu_custom_call.1} parent=35 // pred_fallthru
          _
      $region36: #{tpu_custom_call.1} parent=5 // pred_fallthru
        _
      %p251 = scmp.le.s32.totalorder 1, %s16
      %p252 = scmp.lt.s32.totalorder %s16, 3
      %p253 = pnand %p251, %p252
      %p254 = pneg %p253
      // Predicated region
      $region45: #{tpu_custom_call.1} parent=5 // pred_check
        _
      $region46: #{tpu_custom_call.1} parent=5 // pred_check_branch
        %256 = sbr.rel (%p253) target = $region48
      $region47: #{tpu_custom_call.1} parent=5 // pred_region
        %s257 = ssub.s32 %s16, 1
        %s258 = smul.u32 2, %s21
        %p259 = scmp.lt.s32.totalorder %s258, 3
        %s260 = scalar_select %p259, %s258, 3
        %s261 = smul.addr %s260, 4
        %s262 = scalar_lea.vmem %s0, %s261
        %p263 = pneg %p42
        %p264 = pneg %p39
        %p265 = pneg %p63
        %p266 = pneg %p60
        %p267 = pneg %p84
        %p268 = pneg %p81
        %p269 = pneg %p105
        %p270 = pneg %p102
        %s271 = smul.u32 2, %s21
        %p272 = scmp.lt.s32.totalorder %s271, 3
        %s273 = scalar_select %p272, %s271, 3
        %s274 = smul.addr %s273, 8
        %s275 = scalar_lea.vmem %s4, %s274
        %p276 = pneg %p131
        %p277 = pneg %p128
        %p278 = pneg %p152
        %p279 = pneg %p149
        %p280 = pneg %p173
        %p281 = pneg %p170
        %p282 = pneg %p199
        %p283 = pneg %p196
        %s284 = sand.u32 %s186, 1
        %s285 = scalar_lea.sflag [#allocation3], %s284
        %s286 = sand.u32 %s186, 1
        %s287 = smul.addr %s286, 16
        %s288 = scalar_lea.vmem [#allocation2], %s287
        %s289 = smul.u32 2, %s21
        %p290 = scmp.lt.s32.totalorder %s289, 3
        %s291 = scalar_select %p290, %s289, 3
        %s292 = smul.addr %s291, 4
        %s293 = scalar_lea.vmem %s0, %s292
        %s294 = smul.u32 2, %s21
        %s295 = smul.u32 2, %s21
        %p296 = scmp.lt.s32.totalorder %s295, 3
        %s297 = scalar_select %p296, %s295, 3
        %s298 = smul.addr %s297, 8
        %s299 = scalar_lea.vmem %s4, %s298
        %s300 = smul.u32 2, %s21
        %s301 = smul.u32 2, %s21
        %v303 = vld [vmem:[%s293] sm:$0xf]
        %v304 = vld [vmem:[%s293 + $0x4] sm:$0xf]
        %v305 = vunpack.c.l.bf16 %v303
        %v306 = vunpack.c.l.bf16 %v304
        %v307 = vsub.f32 %v305, 1.0
        %v308 = vsub.f32 %v306, 1.0
        %v309 = vmul.f32 %v307, 1e+30
        %v310 = vmul.f32 %v308, 1e+30
        %v311 = vld [vmem:[%s1] sm:$0xff]
        %v312 = vld [vmem:[%s1 + $0x8] sm:$0xff]
        %v313 = vld [vmem:[%s1 + $0x10] sm:$0xff]
        %v314 = vld [vmem:[%s1 + $0x18] sm:$0xff]
        %v315 = vld [vmem:[%s2] sm:$0xff]
        %v316 = vld [vmem:[%s2 + $0x8] sm:$0xff]
        %v317 = vld [vmem:[%s2 + $0x10] sm:$0x1]
        %vm318 = vcmask 138240
        %v320 = vsel %vm318, %v311, 0
        %v323 = vsel %vm318, %v312, 0
        %v326 = vsel %vm318, %v313, 0
        %v329 = vsel %vm318, %v314, 0
        %vm331 = vcmask 1040384
        %v333 = vsel %vm331, %v317, 0
        %335 = vmatprep.subr.mxu0 0.0
        %336 = vmatpush1.msra.mxu0 0.0
        %337 = vmatprep.subr.mxu0 0.0
        %338 = vmatpush1.msra.mxu0 0.0
        %339 = vmatprep.subr.mxu0 0.0
        %340 = vmatpush1.msra.mxu0 0.0
        %341 = vmatprep.subr.mxu0 0.0
        %342 = vmatpush1.msra.mxu0 0.0
        %343 = vmatprep.subr.mxu0 0.0
        %344 = vmatpush1.msra.mxu0 0.0
        %345 = vmatprep.subr.mxu0 0.0
        %346 = vmatpush1.msra.mxu0 0.0
        %347 = vmatprep.subr.mxu0 0.0
        %348 = vmatpush1.msra.mxu0 0.0
        %349 = vmatprep.subr.mxu0 0.0
        %350 = vmatpush1.msra.mxu0 0.0
        %351 = vmatprep.subr.mxu0 0.0
        %352 = vmatpush1.msra.mxu0 0.0
        %353 = vmatprep.subr.mxu0 0.0
        %354 = vmatpush1.msra.mxu0 0.0
        %355 = vmatprep.subr.mxu0 0.0
        %356 = vmatpush1.msra.mxu0 0.0
        %357 = vmatprep.subr.mxu0 0.0
        %358 = vmatpush1.msra.mxu0 0.0
        %359 = vmatprep.subr.mxu0 0.0
        %360 = vmatpush1.msra.mxu0 0.0
        %361 = vmatprep.subr.mxu0 0.0
        %362 = vmatpush1.msra.mxu0 %v333
        %363 = vmatprep.subr.mxu0 0.0
        %364 = vmatpush1.msra.mxu0 %v316
        %365 = vmatprep.subr.mxu0 0.0
        %366 = vmatpush1.msra.mxu0 %v315
        %367 = vmatprep.subr.mxu0 0.0
        %368 = vmatpush2.msra.mxu0 0.0
        %369 = vmatprep.subr.mxu0 0.0
        %370 = vmatpush2.msra.mxu0 0.0
        %371 = vmatprep.subr.mxu0 0.0
        %372 = vmatpush2.msra.mxu0 0.0
        %373 = vmatprep.subr.mxu0 0.0
        %374 = vmatpush2.msra.mxu0 0.0
        %375 = vmatprep.subr.mxu0 0.0
        %376 = vmatpush2.msra.mxu0 0.0
        %377 = vmatprep.subr.mxu0 0.0
        %378 = vmatpush2.msra.mxu0 0.0
        %379 = vmatprep.subr.mxu0 0.0
        %380 = vmatpush2.msra.mxu0 0.0
        %381 = vmatprep.subr.mxu0 0.0
        %382 = vmatpush2.msra.mxu0 0.0
        %383 = vmatprep.subr.mxu0 0.0
        %384 = vmatpush2.msra.mxu0 0.0
        %385 = vmatprep.subr.mxu0 0.0
        %386 = vmatpush2.msra.mxu0 0.0
        %387 = vmatprep.subr.mxu0 0.0
        %388 = vmatpush2.msra.mxu0 0.0
        %389 = vmatprep.subr.mxu0 0.0
        %390 = vmatpush2.msra.mxu0 0.0
        %391 = vmatprep.subr.mxu0 0.0
        %392 = vmatpush2.msra.mxu0 0.0
        %393 = vmatprep.subr.mxu0 0.0
        %394 = vmatpush2.msra.mxu0 0.0
        %395 = vmatprep.subr.mxu0 0.0
        %396 = vmatpush2.msra.mxu0 0.0
        %397 = vmatprep.subr.mxu0 0.0
        %398 = vmatpush2.msra.mxu0 0.0
        %399 = vmatprep.mubr.f32.mxu0 0.0
        %400 = vmatmul.mubr.f32.gmra.mxu0 %v320
        %v401 = vpop.f32.mrf.mxu0
        %v402 = vadd.f32 0.0, %v401
        %v403 = vpop.f32.mrf.mxu0
        %404 = vmatprep.mubr.f32.mxu0 0.0
        %405 = vmatmul.mubr.f32.gmra.mxu0 %v323
        %v406 = vpop.f32.mrf.mxu0
        %v407 = vadd.f32 0.0, %v406
        %v408 = vpop.f32.mrf.mxu0
        %409 = vmatprep.mubr.f32.mxu0 0.0
        %410 = vmatmul.mubr.f32.gmra.mxu0 %v326
        %v411 = vpop.f32.mrf.mxu0
        %v412 = vadd.f32 0.0, %v411
        %v413 = vpop.f32.mrf.mxu0
        %414 = vmatprep.mubr.f32.mxu0 0.0
        %415 = vmatmul.mubr.f32.gmra.mxu0 %v329
        %v416 = vpop.f32.mrf.mxu0
        %v417 = vadd.f32 0.0, %v416
        %v418 = vpop.f32.mrf.mxu0
        %419 = vdwg.mxu0
        %v420 = vpack.c.bf16 %v407, %v402
        %v421 = vpack.c.bf16 %v417, %v412
        %v422 = vld [vmem:[%s299] sm:$0xff]
        %v423 = vld [vmem:[%s299 + $0x8] sm:$0xff]
        %v424 = vld [vmem:[%s5] sm:$0xff]
        %v425 = vld [vmem:[%s5 + $0x8] sm:$0xff]
        %vm426 = vcmask 130048
        %v428 = vsel %vm426, %v422, 0
        %v431 = vsel %vm426, %v423, 0
        %433 = vmatprep.subr.mxu0 0.0
        %434 = vmatpush1.msra.mxu0 0.0
        %435 = vmatprep.subr.mxu0 0.0
        %436 = vmatpush1.msra.mxu0 0.0
        %437 = vmatprep.subr.mxu0 0.0
        %438 = vmatpush1.msra.mxu0 0.0
        %439 = vmatprep.subr.mxu0 0.0
        %440 = vmatpush1.msra.mxu0 0.0
        %441 = vmatprep.subr.mxu0 0.0
        %442 = vmatpush1.msra.mxu0 0.0
        %443 = vmatprep.subr.mxu0 0.0
        %444 = vmatpush1.msra.mxu0 0.0
        %445 = vmatprep.subr.mxu0 0.0
        %446 = vmatpush1.msra.mxu0 0.0
        %447 = vmatprep.subr.mxu0 0.0
        %448 = vmatpush1.msra.mxu0 0.0
        %449 = vmatprep.subr.mxu0 0.0
        %450 = vmatpush1.msra.mxu0 0.0
        %451 = vmatprep.subr.mxu0 0.0
        %452 = vmatpush1.msra.mxu0 0.0
        %453 = vmatprep.subr.mxu0 0.0
        %454 = vmatpush1.msra.mxu0 0.0
        %455 = vmatprep.subr.mxu0 0.0
        %456 = vmatpush1.msra.mxu0 0.0
        %457 = vmatprep.subr.mxu0 0.0
        %458 = vmatpush1.msra.mxu0 0.0
        %459 = vmatprep.subr.mxu0 0.0
        %460 = vmatpush1.msra.mxu0 0.0
        %461 = vmatprep.subr.mxu0 0.0
        %462 = vmatpush1.msra.mxu0 %v425
        %463 = vmatprep.subr.mxu0 0.0
        %464 = vmatpush1.msra.mxu0 %v424
        %465 = vmatprep.subr.mxu0 0.0
        %466 = vmatpush2.msra.mxu0 0.0
        %467 = vmatprep.subr.mxu0 0.0
        %468 = vmatpush2.msra.mxu0 0.0
        %469 = vmatprep.subr.mxu0 0.0
        %470 = vmatpush2.msra.mxu0 0.0
        %471 = vmatprep.subr.mxu0 0.0
        %472 = vmatpush2.msra.mxu0 0.0
        %473 = vmatprep.subr.mxu0 0.0
        %474 = vmatpush2.msra.mxu0 0.0
        %475 = vmatprep.subr.mxu0 0.0
        %476 = vmatpush2.msra.mxu0 0.0
        %477 = vmatprep.subr.mxu0 0.0
        %478 = vmatpush2.msra.mxu0 0.0
        %479 = vmatprep.subr.mxu0 0.0
        %480 = vmatpush2.msra.mxu0 0.0
        %481 = vmatprep.subr.mxu0 0.0
        %482 = vmatpush2.msra.mxu0 0.0
        %483 = vmatprep.subr.mxu0 0.0
        %484 = vmatpush2.msra.mxu0 0.0
        %485 = vmatprep.subr.mxu0 0.0
        %486 = vmatpush2.msra.mxu0 0.0
        %487 = vmatprep.subr.mxu0 0.0
        %488 = vmatpush2.msra.mxu0 0.0
        %489 = vmatprep.subr.mxu0 0.0
        %490 = vmatpush2.msra.mxu0 0.0
        %491 = vmatprep.subr.mxu0 0.0
        %492 = vmatpush2.msra.mxu0 0.0
        %493 = vmatprep.subr.mxu0 0.0
        %494 = vmatpush2.msra.mxu0 0.0
        %495 = vmatprep.subr.mxu0 0.0
        %496 = vmatpush2.msra.mxu0 0.0
        %497 = vmatprep.mubr.f32.mxu0 0.0
        %498 = vmatmul.mubr.f32.gmra.mxu0 %v428
        %v499 = vpop.f32.mrf.mxu0
        %v500 = vadd.f32 0.0, %v499
        %v501 = vpop.f32.mrf.mxu0
        %502 = vmatprep.mubr.f32.mxu0 0.0
        %503 = vmatmul.mubr.f32.gmra.mxu0 %v431
        %v504 = vpop.f32.mrf.mxu0
        %v505 = vadd.f32 0.0, %v504
        %v506 = vpop.f32.mrf.mxu0
        %507 = vdwg.mxu0
        %v508 = vld [vmem:[%s3] sm:$0xf]
        %510 = vset.pattern.permute.xlu0 0
        %511 = vperm.xlu0 %510, %v500
        %v512 = vpop.permute.xlu0 %511
        %515 = vset.pattern.permute.xlu0 0
        %516 = vperm.xlu0 %515, %v505
        %v517 = vpop.permute.xlu0 %516
        %v519 = vlaneseq
        %v520 = vshrl.u32 %v519, 7
        %v521 = vsub.s32 0, %v520
        %v522 = vrot.slane %v508, %v521
        %v523 = vadd.f32 %v512, %v522
        %v524 = vadd.f32 %v517, %v522
        %v525 = vmul.f32 %v523, 0.2
        %v526 = vmul.f32 %v524, 0.2
        %v527 = vmax.f32 %v523, %v525
        %v528 = vmax.f32 %v524, %v526
        %v529 = vadd.f32 %v527, %v309
        %v530 = vadd.f32 %v528, %v310
        %vm531 = vcmask 261120
        %v532 = vsel %vm531, %v529, -inf
        %533 = vmax.xlane.f32.xlu0 %v532
        %v534 = vpop.xlane.xlu0 %533
        %v535 = vsel %vm531, %v530, -inf
        %536 = vmax.xlane.f32.xlu0 %v535
        %v537 = vpop.xlane.xlu0 %536
        %v538 = vmax.f32 %v534, 0.0
        %v539 = vmax.f32 %v537, 0.0
        %v540 = vsub.f32 %v529, %v538
        %v541 = vsub.f32 %v530, %v539
        %v542 = vmul.f32 %v540, 1.442695
        %v543 = vpow.pop %v542
        %v544 = vmul.f32 %v541, 1.442695
        %v545 = vpow.pop %v544
        %v546 = vpack.c.bf16 %v545, %v543
        %v548 = vsel %vm531, %v546, 0
        %550 = vmatprep.subr.bf16.mxu0 0
        %551 = vmatpush1.bf16.msra.mxu0 0
        %552 = vmatprep.subr.bf16.mxu0 0
        %553 = vmatpush1.bf16.msra.mxu0 0
        %554 = vmatprep.subr.bf16.mxu0 0
        %555 = vmatpush1.bf16.msra.mxu0 0
        %556 = vmatprep.subr.bf16.mxu0 0
        %557 = vmatpush1.bf16.msra.mxu0 0
        %558 = vmatprep.subr.bf16.mxu0 0
        %559 = vmatpush1.bf16.msra.mxu0 0
        %560 = vmatprep.subr.bf16.mxu0 0
        %561 = vmatpush1.bf16.msra.mxu0 0
        %562 = vmatprep.subr.bf16.mxu0 0
        %563 = vmatpush1.bf16.msra.mxu0 %v421
        %564 = vmatprep.subr.bf16.mxu0 0
        %565 = vmatpush1.bf16.msra.mxu0 %v420
        %566 = vmatprep.subr.bf16.mxu0 0
        %567 = vmatpush2.bf16.msra.mxu0 0
        %568 = vmatprep.subr.bf16.mxu0 0
        %569 = vmatpush2.bf16.msra.mxu0 0
        %570 = vmatprep.subr.bf16.mxu0 0
        %571 = vmatpush2.bf16.msra.mxu0 0
        %572 = vmatprep.subr.bf16.mxu0 0
        %573 = vmatpush2.bf16.msra.mxu0 0
        %574 = vmatprep.subr.bf16.mxu0 0
        %575 = vmatpush2.bf16.msra.mxu0 0
        %576 = vmatprep.subr.bf16.mxu0 0
        %577 = vmatpush2.bf16.msra.mxu0 0
        %578 = vmatprep.subr.bf16.mxu0 0
        %579 = vmatpush2.bf16.msra.mxu0 0
        %580 = vmatprep.subr.bf16.mxu0 0
        %581 = vmatpush2.bf16.msra.mxu0 0
        %582 = vmatprep.mubr.bf16.mxu0 0
        %583 = vmatmul.mubr.bf16.gmra.mxu0 %v548
        %v584 = vpop.f32.mrf.mxu0
        %v585 = vadd.f32 0.0, %v584
        %v586 = vpop.f32.mrf.mxu0
        %v587 = vpop.f32.mrf.mxu0
        %v588 = vadd.f32 0.0, %v587
        %v589 = vpop.f32.mrf.mxu0
        %590 = vdwg.mxu0
        %v591 = vadd.f32 %v585, 1e-16
        %v592 = vadd.f32 %v588, 1e-16
        %v593 = vrcp.pop %v591
        %v594 = vrcp.pop %v592
        %596 = vset.pattern.permute.xlu0 8
        %597 = vperm.xlu0 %596, %v593
        %v598 = vpop.permute.xlu0 %597
        %601 = vset.pattern.permute.xlu0 8
        %602 = vperm.xlu0 %601, %v594
        %v603 = vpop.permute.xlu0 %602
        %v605 = vmul.f32 %v585, %v598
        %v606 = vmul.f32 %v588, %v603
        %607 = vrot.lane.b32.xlu0 %v500, 124
        %v608 = vpop.permute.xlu0 %607
        %609 = vrot.lane.b32.xlu0 %v505, 124
        %v610 = vpop.permute.xlu0 %609
        %v613 = vadd.f32 %v605, %v608
        %v614 = vadd.f32 %v606, %v610
        %615 = vset.pattern.permute.xlu0 1
        %616 = vperm.xlu0 %615, %v500
        %v617 = vpop.permute.xlu0 %616
        %619 = vset.pattern.permute.xlu0 1
        %620 = vperm.xlu0 %619, %v505
        %v621 = vpop.permute.xlu0 %620
        %v623 = vlaneseq
        %v624 = vshrl.u32 %v623, 7
        %v625 = vsub.s32 1, %v624
        %v626 = vrot.slane %v508, %v625
        %v627 = vadd.f32 %v617, %v626
        %v628 = vadd.f32 %v621, %v626
        %v629 = vmul.f32 %v627, 0.2
        %v630 = vmul.f32 %v628, 0.2
        %v631 = vmax.f32 %v627, %v629
        %v632 = vmax.f32 %v628, %v630
        %v633 = vadd.f32 %v631, %v309
        %v634 = vadd.f32 %v632, %v310
        %v635 = vsel %vm531, %v633, -inf
        %636 = vmax.xlane.f32.xlu0 %v635
        %v637 = vpop.xlane.xlu0 %636
        %v638 = vsel %vm531, %v634, -inf
        %639 = vmax.xlane.f32.xlu0 %v638
        %v640 = vpop.xlane.xlu0 %639
        %v641 = vmax.f32 %v637, 0.0
        %v642 = vmax.f32 %v640, 0.0
        %v643 = vsub.f32 %v633, %v641
        %v644 = vsub.f32 %v634, %v642
        %v645 = vmul.f32 %v643, 1.442695
        %v646 = vpow.pop %v645
        %v647 = vmul.f32 %v644, 1.442695
        %v648 = vpow.pop %v647
        %v649 = vpack.c.bf16 %v648, %v646
        %652 = vrot.lane.b32.xlu0 %v420, 119
        %v653 = vpop.permute.xlu0 %652
        %654 = vrot.lane.b32.xlu0 %v421, 119
        %v655 = vpop.permute.xlu0 %654
        %v659 = vsel %vm531, %v649, 0
        %661 = vmatprep.subr.bf16.mxu0 0
        %662 = vmatpush1.bf16.msra.mxu0 0
        %663 = vmatprep.subr.bf16.mxu0 0
        %664 = vmatpush1.bf16.msra.mxu0 0
        %665 = vmatprep.subr.bf16.mxu0 0
        %666 = vmatpush1.bf16.msra.mxu0 0
        %667 = vmatprep.subr.bf16.mxu0 0
        %668 = vmatpush1.bf16.msra.mxu0 0
        %669 = vmatprep.subr.bf16.mxu0 0
        %670 = vmatpush1.bf16.msra.mxu0 0
        %671 = vmatprep.subr.bf16.mxu0 0
        %672 = vmatpush1.bf16.msra.mxu0 0
        %673 = vmatprep.subr.bf16.mxu0 0
        %674 = vmatpush1.bf16.msra.mxu0 %v655
        %675 = vmatprep.subr.bf16.mxu0 0
        %676 = vmatpush1.bf16.msra.mxu0 %v653
        %677 = vmatprep.subr.bf16.mxu0 0
        %678 = vmatpush2.bf16.msra.mxu0 0
        %679 = vmatprep.subr.bf16.mxu0 0
        %680 = vmatpush2.bf16.msra.mxu0 0
        %681 = vmatprep.subr.bf16.mxu0 0
        %682 = vmatpush2.bf16.msra.mxu0 0
        %683 = vmatprep.subr.bf16.mxu0 0
        %684 = vmatpush2.bf16.msra.mxu0 0
        %685 = vmatprep.subr.bf16.mxu0 0
        %686 = vmatpush2.bf16.msra.mxu0 0
        %687 = vmatprep.subr.bf16.mxu0 0
        %688 = vmatpush2.bf16.msra.mxu0 0
        %689 = vmatprep.subr.bf16.mxu0 0
        %690 = vmatpush2.bf16.msra.mxu0 0
        %691 = vmatprep.subr.bf16.mxu0 0
        %692 = vmatpush2.bf16.msra.mxu0 0
        %693 = vmatprep.mubr.bf16.mxu0 0
        %694 = vmatmul.mubr.bf16.gmra.mxu0 %v659
        %v695 = vpop.f32.mrf.mxu0
        %v696 = vadd.f32 0.0, %v695
        %v697 = vpop.f32.mrf.mxu0
        %v698 = vpop.f32.mrf.mxu0
        %v699 = vadd.f32 0.0, %v698
        %v700 = vpop.f32.mrf.mxu0
        %701 = vdwg.mxu0
        %v702 = vadd.f32 %v696, 1e-16
        %v703 = vadd.f32 %v699, 1e-16
        %v704 = vrcp.pop %v702
        %v705 = vrcp.pop %v703
        %707 = vset.pattern.permute.xlu0 8
        %708 = vperm.xlu0 %707, %v704
        %v709 = vpop.permute.xlu0 %708
        %712 = vset.pattern.permute.xlu0 8
        %713 = vperm.xlu0 %712, %v705
        %v714 = vpop.permute.xlu0 %713
        %v716 = vmul.f32 %v696, %v709
        %v717 = vmul.f32 %v699, %v714
        %718 = vrot.lane.b32.xlu0 %v500, 116
        %v719 = vpop.permute.xlu0 %718
        %720 = vrot.lane.b32.xlu0 %v505, 116
        %v721 = vpop.permute.xlu0 %720
        %v724 = vadd.f32 %v716, %v719
        %v725 = vadd.f32 %v717, %v721
        %726 = vset.pattern.permute.xlu0 2
        %727 = vperm.xlu0 %726, %v500
        %v728 = vpop.permute.xlu0 %727
        %730 = vset.pattern.permute.xlu0 2
        %731 = vperm.xlu0 %730, %v505
        %v732 = vpop.permute.xlu0 %731
        %v734 = vlaneseq
        %v735 = vshrl.u32 %v734, 7
        %v736 = vsub.s32 2, %v735
        %v737 = vrot.slane %v508, %v736
        %v738 = vadd.f32 %v728, %v737
        %v739 = vadd.f32 %v732, %v737
        %v740 = vmul.f32 %v738, 0.2
        %v741 = vmul.f32 %v739, 0.2
        %v742 = vmax.f32 %v738, %v740
        %v743 = vmax.f32 %v739, %v741
        %v744 = vadd.f32 %v742, %v309
        %v745 = vadd.f32 %v743, %v310
        %v746 = vsel %vm531, %v744, -inf
        %747 = vmax.xlane.f32.xlu0 %v746
        %v748 = vpop.xlane.xlu0 %747
        %v749 = vsel %vm531, %v745, -inf
        %750 = vmax.xlane.f32.xlu0 %v749
        %v751 = vpop.xlane.xlu0 %750
        %v752 = vmax.f32 %v748, 0.0
        %v753 = vmax.f32 %v751, 0.0
        %v754 = vsub.f32 %v744, %v752
        %v755 = vsub.f32 %v745, %v753
        %v756 = vmul.f32 %v754, 1.442695
        %v757 = vpow.pop %v756
        %v758 = vmul.f32 %v755, 1.442695
        %v759 = vpow.pop %v758
        %v760 = vpack.c.bf16 %v759, %v757
        %761 = vrot.lane.b32.xlu0 %v420, 110
        %v762 = vpop.permute.xlu0 %761
        %763 = vrot.lane.b32.xlu0 %v421, 110
        %v764 = vpop.permute.xlu0 %763
        %v768 = vsel %vm531, %v760, 0
        %770 = vmatprep.subr.bf16.mxu0 0
        %771 = vmatpush1.bf16.msra.mxu0 0
        %772 = vmatprep.subr.bf16.mxu0 0
        %773 = vmatpush1.bf16.msra.mxu0 0
        %774 = vmatprep.subr.bf16.mxu0 0
        %775 = vmatpush1.bf16.msra.mxu0 0
        %776 = vmatprep.subr.bf16.mxu0 0
        %777 = vmatpush1.bf16.msra.mxu0 0
        %778 = vmatprep.subr.bf16.mxu0 0
        %779 = vmatpush1.bf16.msra.mxu0 0
        %780 = vmatprep.subr.bf16.mxu0 0
        %781 = vmatpush1.bf16.msra.mxu0 0
        %782 = vmatprep.subr.bf16.mxu0 0
        %783 = vmatpush1.bf16.msra.mxu0 %v764
        %784 = vmatprep.subr.bf16.mxu0 0
        %785 = vmatpush1.bf16.msra.mxu0 %v762
        %786 = vmatprep.subr.bf16.mxu0 0
        %787 = vmatpush2.bf16.msra.mxu0 0
        %788 = vmatprep.subr.bf16.mxu0 0
        %789 = vmatpush2.bf16.msra.mxu0 0
        %790 = vmatprep.subr.bf16.mxu0 0
        %791 = vmatpush2.bf16.msra.mxu0 0
        %792 = vmatprep.subr.bf16.mxu0 0
        %793 = vmatpush2.bf16.msra.mxu0 0
        %794 = vmatprep.subr.bf16.mxu0 0
        %795 = vmatpush2.bf16.msra.mxu0 0
        %796 = vmatprep.subr.bf16.mxu0 0
        %797 = vmatpush2.bf16.msra.mxu0 0
        %798 = vmatprep.subr.bf16.mxu0 0
        %799 = vmatpush2.bf16.msra.mxu0 0
        %800 = vmatprep.subr.bf16.mxu0 0
        %801 = vmatpush2.bf16.msra.mxu0 0
        %802 = vmatprep.mubr.bf16.mxu0 0
        %803 = vmatmul.mubr.bf16.gmra.mxu0 %v768
        %v804 = vpop.f32.mrf.mxu0
        %v805 = vadd.f32 0.0, %v804
        %v806 = vpop.f32.mrf.mxu0
        %v807 = vpop.f32.mrf.mxu0
        %v808 = vadd.f32 0.0, %v807
        %v809 = vpop.f32.mrf.mxu0
        %810 = vdwg.mxu0
        %v811 = vadd.f32 %v805, 1e-16
        %v812 = vadd.f32 %v808, 1e-16
        %v813 = vrcp.pop %v811
        %v814 = vrcp.pop %v812
        %816 = vset.pattern.permute.xlu0 8
        %817 = vperm.xlu0 %816, %v813
        %v818 = vpop.permute.xlu0 %817
        %821 = vset.pattern.permute.xlu0 8
        %822 = vperm.xlu0 %821, %v814
        %v823 = vpop.permute.xlu0 %822
        %v825 = vmul.f32 %v805, %v818
        %v826 = vmul.f32 %v808, %v823
        %827 = vrot.lane.b32.xlu0 %v500, 108
        %v828 = vpop.permute.xlu0 %827
        %829 = vrot.lane.b32.xlu0 %v505, 108
        %v830 = vpop.permute.xlu0 %829
        %v833 = vadd.f32 %v825, %v828
        %v834 = vadd.f32 %v826, %v830
        %835 = vset.pattern.permute.xlu0 3
        %836 = vperm.xlu0 %835, %v500
        %v837 = vpop.permute.xlu0 %836
        %839 = vset.pattern.permute.xlu0 3
        %840 = vperm.xlu0 %839, %v505
        %v841 = vpop.permute.xlu0 %840
        %v843 = vlaneseq
        %v844 = vshrl.u32 %v843, 7
        %v845 = vsub.s32 3, %v844
        %v846 = vrot.slane %v508, %v845
        %v847 = vadd.f32 %v837, %v846
        %v848 = vadd.f32 %v841, %v846
        %v849 = vmul.f32 %v847, 0.2
        %v850 = vmul.f32 %v848, 0.2
        %v851 = vmax.f32 %v847, %v849
        %v852 = vmax.f32 %v848, %v850
        %v853 = vadd.f32 %v851, %v309
        %v854 = vadd.f32 %v852, %v310
        %v855 = vsel %vm531, %v853, -inf
        %856 = vmax.xlane.f32.xlu0 %v855
        %v857 = vpop.xlane.xlu0 %856
        %v858 = vsel %vm531, %v854, -inf
        %859 = vmax.xlane.f32.xlu0 %v858
        %v860 = vpop.xlane.xlu0 %859
        %v861 = vmax.f32 %v857, 0.0
        %v862 = vmax.f32 %v860, 0.0
        %v863 = vsub.f32 %v853, %v861
        %v864 = vsub.f32 %v854, %v862
        %v865 = vmul.f32 %v863, 1.442695
        %v866 = vpow.pop %v865
        %v867 = vmul.f32 %v864, 1.442695
        %v868 = vpow.pop %v867
        %v869 = vpack.c.bf16 %v868, %v866
        %870 = vrot.lane.b32.xlu0 %v420, 101
        %v871 = vpop.permute.xlu0 %870
        %872 = vrot.lane.b32.xlu0 %v421, 101
        %v873 = vpop.permute.xlu0 %872
        %v877 = vsel %vm531, %v869, 0
        %879 = vmatprep.subr.bf16.mxu0 0
        %880 = vmatpush1.bf16.msra.mxu0 0
        %881 = vmatprep.subr.bf16.mxu0 0
        %882 = vmatpush1.bf16.msra.mxu0 0
        %883 = vmatprep.subr.bf16.mxu0 0
        %884 = vmatpush1.bf16.msra.mxu0 0
        %885 = vmatprep.subr.bf16.mxu0 0
        %886 = vmatpush1.bf16.msra.mxu0 0
        %887 = vmatprep.subr.bf16.mxu0 0
        %888 = vmatpush1.bf16.msra.mxu0 0
        %889 = vmatprep.subr.bf16.mxu0 0
        %890 = vmatpush1.bf16.msra.mxu0 0
        %891 = vmatprep.subr.bf16.mxu0 0
        %892 = vmatpush1.bf16.msra.mxu0 %v873
        %893 = vmatprep.subr.bf16.mxu0 0
        %894 = vmatpush1.bf16.msra.mxu0 %v871
        %895 = vmatprep.subr.bf16.mxu0 0
        %896 = vmatpush2.bf16.msra.mxu0 0
        %897 = vmatprep.subr.bf16.mxu0 0
        %898 = vmatpush2.bf16.msra.mxu0 0
        %899 = vmatprep.subr.bf16.mxu0 0
        %900 = vmatpush2.bf16.msra.mxu0 0
        %901 = vmatprep.subr.bf16.mxu0 0
        %902 = vmatpush2.bf16.msra.mxu0 0
        %903 = vmatprep.subr.bf16.mxu0 0
        %904 = vmatpush2.bf16.msra.mxu0 0
        %905 = vmatprep.subr.bf16.mxu0 0
        %906 = vmatpush2.bf16.msra.mxu0 0
        %907 = vmatprep.subr.bf16.mxu0 0
        %908 = vmatpush2.bf16.msra.mxu0 0
        %909 = vmatprep.subr.bf16.mxu0 0
        %910 = vmatpush2.bf16.msra.mxu0 0
        %911 = vmatprep.mubr.bf16.mxu0 0
        %912 = vmatmul.mubr.bf16.gmra.mxu0 %v877
        %v913 = vpop.f32.mrf.mxu0
        %v914 = vadd.f32 0.0, %v913
        %v915 = vpop.f32.mrf.mxu0
        %v916 = vpop.f32.mrf.mxu0
        %v917 = vadd.f32 0.0, %v916
        %v918 = vpop.f32.mrf.mxu0
        %919 = vdwg.mxu0
        %v920 = vadd.f32 %v914, 1e-16
        %v921 = vadd.f32 %v917, 1e-16
        %v922 = vrcp.pop %v920
        %v923 = vrcp.pop %v921
        %925 = vset.pattern.permute.xlu0 8
        %926 = vperm.xlu0 %925, %v922
        %v927 = vpop.permute.xlu0 %926
        %930 = vset.pattern.permute.xlu0 8
        %931 = vperm.xlu0 %930, %v923
        %v932 = vpop.permute.xlu0 %931
        %v934 = vmul.f32 %v914, %v927
        %v935 = vmul.f32 %v917, %v932
        %936 = vrot.lane.b32.xlu0 %v500, 100
        %v937 = vpop.permute.xlu0 %936
        %938 = vrot.lane.b32.xlu0 %v505, 100
        %v939 = vpop.permute.xlu0 %938
        %v942 = vadd.f32 %v934, %v937
        %v943 = vadd.f32 %v935, %v939
        %946 = vrot.lane.b32.xlu0 %v724, 8
        %v947 = vpop.permute.xlu0 %946
        %948 = vrot.lane.b32.xlu0 %v725, 8
        %v949 = vpop.permute.xlu0 %948
        %954 = vrot.lane.b32.xlu0 %v833, 16
        %v955 = vpop.permute.xlu0 %954
        %956 = vrot.lane.b32.xlu0 %v834, 16
        %v957 = vpop.permute.xlu0 %956
        %962 = vrot.lane.b32.xlu0 %v942, 24
        %v963 = vpop.permute.xlu0 %962
        %964 = vrot.lane.b32.xlu0 %v943, 24
        %v965 = vpop.permute.xlu0 %964
        %vm968 = vcmask 64512
        %v969 = vsel %vm968, %v613, %v947
        %v970 = vsel %vm968, %v614, %v949
        %v971 = vsel %vm426, %v969, %v955
        %v972 = vsel %vm426, %v970, %v957
        %vm973 = vcmask 195584
        %v974 = vsel %vm973, %v971, %v963
        %v975 = vsel %vm973, %v972, %v965
        %v976 = vsel %vm531, %v974, 0.0
        %v977 = vsel %vm531, %v975, 0.0
        %v978 = vld [vmem:[%s6] sm:$0x1]
        %v980 = vlaneseq
        %v981 = vshrl.u32 %v980, 7
        %v982 = vsub.s32 0, %v981
        %v983 = vrot.slane %v978, %v982
        %v985 = vadd.f32 %v976, %v983
        %v986 = vadd.f32 %v977, %v983
        %vm987 = vcmp.gt.f32.partialorder %v985, 0.0
        %vm988 = vcmp.gt.f32.partialorder %v986, 0.0
        %v989 = vmul.f32 %v985, 1.442695
        %v990 = vpow.pop %v989
        %v991 = vmul.f32 %v986, 1.442695
        %v992 = vpow.pop %v991
        %v993 = vsub.f32 %v990, 1.0
        %v994 = vsub.f32 %v992, 1.0
        %v995 = vsel %vm987, %v985, %v993
        %v996 = vsel %vm988, %v986, %v994
        %997 = vst [vmem:[%s288] sm:$0xff] %v995
        %998 = vst [vmem:[%s288 + $0x8] sm:$0xff] %v996
        %s999 = sand.u32 %s186, 1
        %s1000 = scalar_lea.sflag [#allocation3], %s999
        %s1001 = sand.u32 %s186, 1
        %s1002 = smul.addr %s1001, 16
        %s1003 = scalar_lea.vmem [#allocation2], %s1002
        // Predicated region
        $region49: #{tpu_custom_call.1} parent=47 // pred_check
          %p1004 = pneg %p196
        $region50: #{tpu_custom_call.1} parent=47 // pred_check_branch
          %1006 = sbr.rel (%p1004) target = $region52
        $region51: #{tpu_custom_call.1} parent=47 // pred_region
          %s1007 = smul.u32 2, %s21
          %s1009 = ssub.s32 256, 256
          %1010 = vsyncadd %s1000, %s1009
          %s1011 = smul.addr %s1007, 128
          %s1012 = scalar_lea.hbm %s7, %s1011
          %s1013 = sshll.u32 %s1003, 4
          %s1014 = int_to_ptr.vmem [resolvable:$true] %s1013
          %1019 = dma.vmem_to_hbm [thread:$0]  %s1014, 256, %s1012, %s1000, 128, 128, 8
        $region52: #{tpu_custom_call.1} parent=47 // pred_fallthru
          _
      $region48: #{tpu_custom_call.1} parent=5 // pred_fallthru
        _
      %p1020 = scmp.le.s32.totalorder 2, %s16
      // Predicated region
      $region53: #{tpu_custom_call.1} parent=5 // pred_check
        %p1021 = pneg %p1020
      $region54: #{tpu_custom_call.1} parent=5 // pred_check_branch
        %1023 = sbr.rel (%p1021) target = $region56
      $region55: #{tpu_custom_call.1} parent=5 // pred_region
        %s1024 = ssub.s32 %s16, 2
        // Predicated region
        $region57: #{tpu_custom_call.1} parent=55 // pred_check
          %p1025 = pneg %p202
        $region58: #{tpu_custom_call.1} parent=55 // pred_check_branch
          %1027 = sbr.rel (%p1025) target = $region60
        $region59: #{tpu_custom_call.1} parent=55 // pred_region
          %s1028 = sand.u32 %s187, 1
          %s1029 = scalar_lea.sflag [#allocation3], %s1028
          %s1030 = sand.u32 %s187, 1
          %s1031 = smul.addr %s1030, 16
          %s1032 = scalar_lea.vmem [#allocation2], %s1031
          %1033 = dma.done %s1029, 256
        $region60: #{tpu_custom_call.1} parent=55 // pred_fallthru
          _
      $region56: #{tpu_custom_call.1} parent=5 // pred_fallthru
        _
    $region6: #{tpu_custom_call.1} parent=1 // loop_footer
      %s20 = sadd.s32 1, %s16
    $region7: #{tpu_custom_call.1} parent=1 // loop_footer_branch
      %15 = sbr.rel target = $region3
    $region8: #{tpu_custom_call.1} parent=1 // loop_exit
      _
    %1034 = vsyncpa [#allocation3], 1
    %s1035 = scalar_lea.sflag [#allocation3], 1
    %1036 = vsyncpa %s1035, 1

</llo_original>
